<compile_context>
chip_gen: v7x
topology: tpu7x:2x2x1
jax: 0.10.0
libtpu: 0.0.40
codegen_flags: <defaults>
</compile_context>

<pallas_src>
import functools

import jax
import jax.numpy as jnp
from jax import lax
from jax.experimental import pallas as pl
from jax.experimental.pallas import tpu as pltpu


LANES = 128          # lane-dense padded action dimension
NEG_BIG = -1e30      # padded-logit bias: exp(NEG_BIG - m) == 0.0


def _round_up(x, m):
    return ((x + m - 1) // m) * m


def _choose_tb(B, block_b):
    """Pick the batch tile: big enough to amortize grid-step overhead, but
    with >=2 grid steps (v7x megacore) and a multiple of 128 when B > 128."""
    block_b = max(128, _round_up(block_b, 128))
    if B <= 128:
        # single step; rows past B (if any) are masked edge rows
        return _round_up(max(B, 8), 8)
    half = _round_up((B + 1) // 2, 128)     # guarantees grid >= 2 steps
    return min(block_b, half)


def actor_kernel(x_ref, w1_ref, b1_ref, w2_ref, b2_ref, w3_ref, b3_ref,
                 probs_ref, *, sub):
    """Fused 3-layer MLP + softmax for one batch tile.

    x_ref:  (TB, n_in) f32      w1: f32, w2/w3: bf16      b*: f32
    probs_ref: (TB, 128) f32  (lanes >= n_actions hold exactly 0 probability)

    The TB rows are processed in `sub`-row chunks to bound vreg pressure.
    """
    n_sub = x_ref.shape[0] // sub

    def body(c, carry):
        r0 = pl.multiple_of(c * sub, sub)

        # fc1 + relu   (sub, n_in) @ (n_in, 128) -> (sub, 128), all f32 (K=8)
        x = x_ref[pl.ds(r0, sub), :]
        h1 = jnp.dot(x, w1_ref[...], preferred_element_type=jnp.float32)
        h1 = jnp.maximum(h1 + b1_ref[...], 0.0)

        # fc2 + relu   (sub, 128) @ (128, 256) -> (sub, 256), f32 accumulate
        h2 = jnp.dot(h1.astype(jnp.bfloat16), w2_ref[...],
                     preferred_element_type=jnp.float32)
        h2 = jnp.maximum(h2 + b2_ref[...], 0.0)

        # fc3          (sub, 256) @ (256, 128) -> (sub, 128)  (padded, lane-dense)
        logits = jnp.dot(h2.astype(jnp.bfloat16), w3_ref[...],
                         preferred_element_type=jnp.float32) + b3_ref[...]

        # numerically-stable softmax along the (dense) lane dim; padded lanes
        # have logits ~= -1e30 so they contribute exactly zero mass.
        m = jnp.max(logits, axis=-1, keepdims=True)
        e = jnp.exp(logits - m)
        s = jnp.sum(e, axis=-1, keepdims=True)
        probs_ref[pl.ds(r0, sub), :] = (e / s).astype(probs_ref.dtype)
        return carry

    lax.fori_loop(0, n_sub, body, 0, unroll=True)


def prepare_actor_params(params):
    """One-time prep: fc2/fc3 weights -> bf16, pad fc3 out-dim to 128 lanes."""
    w1, b1, w2, b2, w3, b3 = params
    n_actions = w3.shape[1]

    w1 = w1.astype(jnp.float32)              # K=8: bf16 cast buys nothing here
    w2 = w2.astype(jnp.bfloat16)

    w3p = jnp.zeros((w3.shape[0], LANES), jnp.bfloat16)
    w3p = w3p.at[:, :n_actions].set(w3.astype(jnp.bfloat16))
    b3p = jnp.full((1, LANES), NEG_BIG, jnp.float32)
    b3p = b3p.at[:, :n_actions].set(b3.reshape(1, -1).astype(jnp.float32))

    b1 = b1.reshape(1, -1).astype(jnp.float32)
    b2 = b2.reshape(1, -1).astype(jnp.float32)
    return (w1, b1, w2, b2, w3p, b3p), n_actions


def actor_forward(state, prepared_params, *, block_b=512):
    """Batched forward pass.

    Returns the lane-dense softmax probabilities of shape (B, 128); columns
    >= n_actions carry exactly zero probability.  No wrapper pad or output
    slice — downstream should consume the padded tensor directly.
    """
    w1, b1, w2, b2, w3p, b3p = prepared_params
    B, n_in = state.shape
    state = state.astype(jnp.float32)

    TB = _choose_tb(B, block_b)
    SUB = min(TB, 128)
    assert TB % SUB == 0
    grid = ((B + TB - 1) // TB,)

    def resident(arr):
        # Full-array block, same block for every grid step (weights/biases).
        return pl.BlockSpec(arr.shape, lambda i: (0, 0))

    grid_spec = pltpu.PrefetchScalarGridSpec(
        num_scalar_prefetch=0,
        grid=grid,
        in_specs=[
            pl.BlockSpec((TB, n_in), lambda i: (i, 0)),   # state: walks batch
            resident(w1), resident(b1),
            resident(w2), resident(b2),
            resident(w3p), resident(b3p),
        ],
        out_specs=pl.BlockSpec((TB, LANES), lambda i: (i, 0)),
    )

    return pl.pallas_call(
        functools.partial(actor_kernel, sub=SUB),
        out_shape=jax.ShapeDtypeStruct((B, LANES), jnp.float32),
        grid_spec=grid_spec,
        compiler_params=pltpu.CompilerParams(
            dimension_semantics=("parallel",),   # shard batch across TCs (v7x)
        ),
    )(state, w1, b1, w2, b2, w3p, b3p)


def init_actor_params(key, n_inputs, n_actions):
    """Deterministic init mimicking nn.Linear's uniform(-1/sqrt(fan_in), ...)."""
    def linear(key, fan_in, fan_out):
        kw, kb = jax.random.split(key)
        bound = 1.0 / jnp.sqrt(fan_in)
        w = jax.random.uniform(kw, (fan_in, fan_out), jnp.float32, -bound, bound)
        b = jax.random.uniform(kb, (1, fan_out), jnp.float32, -bound, bound)
        return w, b

    k1, k2, k3 = jax.random.split(key, 3)
    w1, b1 = linear(k1, n_inputs, 128)
    w2, b2 = linear(k2, 128, 256)
    w3, b3 = linear(k3, 256, n_actions)
    return (w1, b1, w2, b2, w3, b3)


def _reference_forward(state, params):
    """Pure-JAX f32 reference (matches the PyTorch module)."""
    w1, b1, w2, b2, w3, b3 = params
    h1 = jnp.maximum(state @ w1 + b1, 0.0)
    h2 = jnp.maximum(h1 @ w2 + b2, 0.0)
    logits = h2 @ w3 + b3
    return jax.nn.softmax(logits, axis=-1)


def _check(state, prepared, params, n_act):
    probs_padded = jax.block_until_ready(actor_forward(state, prepared))
    B = state.shape[0]
    assert probs_padded.shape == (B, LANES)
    # padded action lanes carry (essentially exactly) zero probability
    assert bool(jnp.all(probs_padded[:, n_act:] < 1e-6))
    probs = probs_padded[:, :n_act]          # test-only slice for comparison
    assert bool(jnp.all(probs >= 0.0))
    assert bool(jnp.allclose(jnp.sum(probs, axis=-1), 1.0, atol=1e-4))
    ref = _reference_forward(state, params)  # bf16 fc2/fc3 -> ~1e-2 tolerance
    assert bool(jnp.allclose(probs, ref, atol=2e-2))
    return probs


if __name__ == "__main__":
    key = jax.random.PRNGKey(0)
    k_params, k_state, k_state2 = jax.random.split(key, 3)

    n_inputs = 8      # 8-dim observation vector (nn.Linear(*n_inputs, 128))
    n_actions = 4

    params = init_actor_params(k_params, n_inputs, n_actions)
    prepared, n_act = prepare_actor_params(params)

    # small batch: single grid step
    state_small = jax.random.normal(k_state, (8, n_inputs), jnp.float32)
    _check(state_small, prepared, params, n_act)

    # larger batch: exercises >=2 grid steps, the 128-row sub-chunk loop and
    # the masked edge block (272 = 2*128 + 16, TB = 256)
    state_big = jax.random.normal(k_state2, (272, n_inputs), jnp.float32)
    _check(state_big, prepared, params, n_act)

    print("KERNEL_OK")
</pallas_src>

<mosaic_0001>
module attributes {stable_mosaic.version = 11 : i64} {
  func.func @actor_kernel(%arg0: i32, %arg1: memref<8x8xf32, #tpu.memory_space<vmem>>, %arg2: memref<8x128xf32, #tpu.memory_space<vmem>>, %arg3: memref<1x128xf32, #tpu.memory_space<vmem>>, %arg4: memref<128x256xbf16, #tpu.memory_space<vmem>>, %arg5: memref<1x256xf32, #tpu.memory_space<vmem>>, %arg6: memref<256x128xbf16, #tpu.memory_space<vmem>>, %arg7: memref<1x128xf32, #tpu.memory_space<vmem>>, %arg8: memref<8x128xf32, #tpu.memory_space<vmem>>) attributes {dimension_semantics = [#tpu.dimension_semantics<parallel>], iteration_bounds = array<i64: 1>, scalar_prefetch = 0 : i64, scratch_operands = 0 : i64, tpu.core_type = #tpu.core_type<tc>, window_params = [{transform_indices = @transform_0, window_bounds = array<i64: 8, 8>}, {pipeline_mode = #tpu.pipeline_mode<synchronous>, transform_indices = @transform_1, window_bounds = array<i64: 8, 128>}, {pipeline_mode = #tpu.pipeline_mode<synchronous>, transform_indices = @transform_2, window_bounds = array<i64: 1, 128>}, {pipeline_mode = #tpu.pipeline_mode<synchronous>, transform_indices = @transform_3, window_bounds = array<i64: 128, 256>}, {pipeline_mode = #tpu.pipeline_mode<synchronous>, transform_indices = @transform_4, window_bounds = array<i64: 1, 256>}, {pipeline_mode = #tpu.pipeline_mode<synchronous>, transform_indices = @transform_5, window_bounds = array<i64: 256, 128>}, {pipeline_mode = #tpu.pipeline_mode<synchronous>, transform_indices = @transform_6, window_bounds = array<i64: 1, 128>}, {transform_indices = @transform_7, window_bounds = array<i64: 8, 128>}]} {
    %c0_i32 = arith.constant 0 : i32
    %c8_i32 = arith.constant 8 : i32
    %0 = arith.muli %c0_i32, %c8_i32 : i32
    %1 = tpu.assume_multiple %0, 8 : i32
    %2 = arith.index_cast %1 : i32 to index
    %c0 = arith.constant 0 : index
    %3 = vector.load %arg1[%2, %c0] : memref<8x8xf32, #tpu.memory_space<vmem>>, vector<8x8xf32>
    %c0_0 = arith.constant 0 : index
    %c0_1 = arith.constant 0 : index
    %4 = vector.load %arg2[%c0_0, %c0_1] : memref<8x128xf32, #tpu.memory_space<vmem>>, vector<8x128xf32>
    %cst = arith.constant dense<0.000000e+00> : vector<8x128xf32>
    %5 = tpu.matmul %3, %4, %cst {dimension_numbers = #tpu.dot_dimension_numbers<[1], [0], [0], [1], [0, 0, 1, 1], [], []>} : vector<8x8xf32>, vector<8x128xf32>, vector<8x128xf32> -> vector<8x128xf32>
    %c0_2 = arith.constant 0 : index
    %c0_3 = arith.constant 0 : index
    %6 = vector.load %arg3[%c0_2, %c0_3] : memref<1x128xf32, #tpu.memory_space<vmem>>, vector<1x128xf32>
    %7 = vector.broadcast %6 : vector<1x128xf32> to vector<8x128xf32>
    %8 = arith.addf %5, %7 : vector<8x128xf32>
    %cst_4 = arith.constant 0.000000e+00 : f32
    %9 = vector.broadcast %cst_4 : f32 to vector<8x128xf32>
    %10 = arith.maximumf %8, %9 : vector<8x128xf32>
    %11 = arith.truncf %10 : vector<8x128xf32> to vector<8x128xbf16>
    %c0_5 = arith.constant 0 : index
    %c0_6 = arith.constant 0 : index
    %12 = vector.load %arg4[%c0_5, %c0_6] : memref<128x256xbf16, #tpu.memory_space<vmem>>, vector<128x256xbf16>
    %cst_7 = arith.constant dense<0.000000e+00> : vector<8x256xf32>
    %13 = tpu.matmul %11, %12, %cst_7 {dimension_numbers = #tpu.dot_dimension_numbers<[1], [0], [0], [1], [0, 0, 1, 1], [], []>} : vector<8x128xbf16>, vector<128x256xbf16>, vector<8x256xf32> -> vector<8x256xf32>
    %c0_8 = arith.constant 0 : index
    %c0_9 = arith.constant 0 : index
    %14 = vector.load %arg5[%c0_8, %c0_9] : memref<1x256xf32, #tpu.memory_space<vmem>>, vector<1x256xf32>
    %15 = vector.broadcast %14 : vector<1x256xf32> to vector<8x256xf32>
    %16 = arith.addf %13, %15 : vector<8x256xf32>
    %cst_10 = arith.constant 0.000000e+00 : f32
    %17 = vector.broadcast %cst_10 : f32 to vector<8x256xf32>
    %18 = arith.maximumf %16, %17 : vector<8x256xf32>
    %19 = arith.truncf %18 : vector<8x256xf32> to vector<8x256xbf16>
    %c0_11 = arith.constant 0 : index
    %c0_12 = arith.constant 0 : index
    %20 = vector.load %arg6[%c0_11, %c0_12] : memref<256x128xbf16, #tpu.memory_space<vmem>>, vector<256x128xbf16>
    %cst_13 = arith.constant dense<0.000000e+00> : vector<8x128xf32>
    %21 = tpu.matmul %19, %20, %cst_13 {dimension_numbers = #tpu.dot_dimension_numbers<[1], [0], [0], [1], [0, 0, 1, 1], [], []>} : vector<8x256xbf16>, vector<256x128xbf16>, vector<8x128xf32> -> vector<8x128xf32>
    %c0_14 = arith.constant 0 : index
    %c0_15 = arith.constant 0 : index
    %22 = vector.load %arg7[%c0_14, %c0_15] : memref<1x128xf32, #tpu.memory_space<vmem>>, vector<1x128xf32>
    %23 = vector.broadcast %22 : vector<1x128xf32> to vector<8x128xf32>
    %24 = arith.addf %21, %23 : vector<8x128xf32>
    %cst_16 = arith.constant dense<0xFF800000> : vector<8xf32>
    %25 = vector.multi_reduction <maximumf>, %24, %cst_16 [1] : vector<8x128xf32> to vector<8xf32>
    %26 = vector.shape_cast %25 : vector<8xf32> to vector<8x1xf32>
    %27 = vector.broadcast %26 : vector<8x1xf32> to vector<8x128xf32>
    %28 = arith.subf %24, %27 : vector<8x128xf32>
    %29 = math.exp %28 : vector<8x128xf32>
    %cst_17 = arith.constant dense<0.000000e+00> : vector<8xf32>
    %30 = vector.multi_reduction <add>, %29, %cst_17 [1] : vector<8x128xf32> to vector<8xf32>
    %31 = vector.shape_cast %30 : vector<8xf32> to vector<8x1xf32>
    %32 = vector.broadcast %31 : vector<8x1xf32> to vector<8x128xf32>
    %33 = arith.divf %29, %32 : vector<8x128xf32>
    %34 = arith.index_cast %1 : i32 to index
    %c0_18 = arith.constant 0 : index
    %35 = vector.load %arg8[%34, %c0_18] : memref<8x128xf32, #tpu.memory_space<vmem>>, vector<8x128xf32>
    tpu.vector_store %arg8[%34, %c0_18], %33 {strides = array<i32>} : memref<8x128xf32, #tpu.memory_space<vmem>>, vector<8x128xf32>,
    %c1_i32 = arith.constant 1 : i32
    return
  }
  func.func @transform_0(%arg0: i32) -> (i32, i32) {
    %c0_i32 = arith.constant 0 : i32
    %c0_i32_0 = arith.constant 0 : i32
    return %arg0, %c0_i32 : i32, i32
  }
  func.func @transform_1(%arg0: i32) -> (i32, i32) {
    %c0_i32 = arith.constant 0 : i32
    %c0_i32_0 = arith.constant 0 : i32
    %c0_i32_1 = arith.constant 0 : i32
    return %c0_i32, %c0_i32_0 : i32, i32
  }
  func.func @transform_2(%arg0: i32) -> (i32, i32) {
    %c0_i32 = arith.constant 0 : i32
    %c0_i32_0 = arith.constant 0 : i32
    %c0_i32_1 = arith.constant 0 : i32
    return %c0_i32, %c0_i32_0 : i32, i32
  }
  func.func @transform_3(%arg0: i32) -> (i32, i32) {
    %c0_i32 = arith.constant 0 : i32
    %c0_i32_0 = arith.constant 0 : i32
    %c0_i32_1 = arith.constant 0 : i32
    return %c0_i32, %c0_i32_0 : i32, i32
  }
  func.func @transform_4(%arg0: i32) -> (i32, i32) {
    %c0_i32 = arith.constant 0 : i32
    %c0_i32_0 = arith.constant 0 : i32
    %c0_i32_1 = arith.constant 0 : i32
    return %c0_i32, %c0_i32_0 : i32, i32
  }
  func.func @transform_5(%arg0: i32) -> (i32, i32) {
    %c0_i32 = arith.constant 0 : i32
    %c0_i32_0 = arith.constant 0 : i32
    %c0_i32_1 = arith.constant 0 : i32
    return %c0_i32, %c0_i32_0 : i32, i32
  }
  func.func @transform_6(%arg0: i32) -> (i32, i32) {
    %c0_i32 = arith.constant 0 : i32
    %c0_i32_0 = arith.constant 0 : i32
    %c0_i32_1 = arith.constant 0 : i32
    return %c0_i32, %c0_i32_0 : i32, i32
  }
  func.func @transform_7(%arg0: i32) -> (i32, i32) {
    %c0_i32 = arith.constant 0 : i32
    %c0_i32_0 = arith.constant 0 : i32
    return %arg0, %c0_i32 : i32, i32
  }
}

</mosaic_0001>

<llo_original>
// kernel: tpu_custom_call.1
$region0: #{tpu_custom_call.1}
  #allocation0 [shape = 'u32[]', space=smem, size = 0x4, offset = 0x4, fixed_abs, tag = 'smem constant byte address 0x4 - core index']
  #allocation1 [shape = 'u32[144,128]{1,0:T(1,128)}', space=vmem, size = 0x12000, scoped, tag = 'internal scratch']
  %s0 = inlined_call_operand.hbm [shape: f32[8,8], index: 0, kind: input, shape index: {}]
  %s1 = inlined_call_operand.hbm [shape: f32[8,128], index: 1, kind: input, shape index: {}]
  %s2 = inlined_call_operand.vmem [shape: f32[1,128], index: 2, kind: input, shape index: {}]
  %s3 = inlined_call_operand.hbm [shape: bf16[128,256], index: 3, kind: input, shape index: {}]
  %s4 = inlined_call_operand.vmem [shape: f32[1,256], index: 4, kind: input, shape index: {}]
  %s5 = inlined_call_operand.hbm [shape: bf16[256,128], index: 5, kind: input, shape index: {}]
  %s6 = inlined_call_operand.vmem [shape: f32[1,128], index: 6, kind: input, shape index: {}]
  %s7 = inlined_call_operand.hbm [shape: f32[8,128], index: 7, kind: output, shape index: {}]
  %s8 = sld [smem:[#allocation0]]
  $region54: #{tpu_custom_call.1} parent=0
    _
  %s10 = ssub.s32 1, %s8
  %s11 = scalar_select 0, %s10, %s8
  $region1: #{tpu_custom_call.1} parent=0
    #allocation2 [shape = 'u8[4096]{0}', space=vmem, size = 0x1000, scoped, tag = 'input window, operand 0, single buffered']
    #allocation3 [shape = 's32[1]{0}', space=sflag, size = 0x4, scoped, tag = 'scoped memory for tpu_custom_call.1']
    #allocation4 [shape = 's32[1]{0}', space=sflag, size = 0x4, scoped, tag = 'scoped memory for tpu_custom_call.1']
    #allocation5 [shape = 'u8[4096]{0}', space=vmem, size = 0x1000, scoped, tag = 'input window, operand 1, single buffered']
    #allocation6 [shape = 's32[1]{0}', space=sflag, size = 0x4, scoped, tag = 'scoped memory for tpu_custom_call.1']
    #allocation7 [shape = 'u8[65536]{0}', space=vmem, size = 0x10000, scoped, tag = 'input window, operand 3, single buffered']
    #allocation8 [shape = 'u8[65536]{0}', space=vmem, size = 0x10000, scoped, tag = 'input window, operand 5, single buffered']
    #allocation9 [shape = 's32[1]{0}', space=sflag, size = 0x4, scoped, tag = 'scoped memory for tpu_custom_call.1']
    #allocation10 [shape = 'u8[4096]{0}', space=vmem, size = 0x1000, scoped, tag = 'output window, operand 0, single buffered']
    %12 = vsyncpa [#allocation3], 0
    %13 = vsyncpa [#allocation6], 0
    %14 = vsyncpa [#allocation9], 0
    %15 = vsyncpa [#allocation4], 0
    // Predicated region
    $region2: #{tpu_custom_call.1} parent=1 // pred_check
      _
    $region3: #{tpu_custom_call.1} parent=1 // pred_check_branch
      %17 = sbr.rel (0) target = $region5
    $region4: #{tpu_custom_call.1} parent=1 // pred_region
      %s19 = ssub.s32 128, 128
      %20 = vsyncadd [#allocation3], %s19
      %s22 = sshll.u32 [#allocation2], 4
      %s23 = int_to_ptr.vmem [resolvable:$true] %s22
      %25 = dma.hbm_to_vmem [thread:$0]  %s0, 128, %s23, [#allocation3]
    $region5: #{tpu_custom_call.1} parent=1 // pred_fallthru
      _
    // Predicated region
    $region6: #{tpu_custom_call.1} parent=1 // pred_check
      _
    $region7: #{tpu_custom_call.1} parent=1 // pred_check_branch
      %27 = sbr.rel (0) target = $region9
    $region8: #{tpu_custom_call.1} parent=1 // pred_region
      %s29 = ssub.s32 128, 128
      %30 = vsyncadd [#allocation6], %s29
      %s32 = sshll.u32 [#allocation5], 4
      %s33 = int_to_ptr.vmem [resolvable:$true] %s32
      %35 = dma.hbm_to_vmem [thread:$0]  %s1, 128, %s33, [#allocation6]
    $region9: #{tpu_custom_call.1} parent=1 // pred_fallthru
      _
    // Predicated region
    $region10: #{tpu_custom_call.1} parent=1 // pred_check
      _
    $region11: #{tpu_custom_call.1} parent=1 // pred_check_branch
      %37 = sbr.rel (0) target = $region13
    $region12: #{tpu_custom_call.1} parent=1 // pred_region
      _
    $region13: #{tpu_custom_call.1} parent=1 // pred_fallthru
      _
    // Predicated region
    $region14: #{tpu_custom_call.1} parent=1 // pred_check
      _
    $region15: #{tpu_custom_call.1} parent=1 // pred_check_branch
      %39 = sbr.rel (0) target = $region17
    $region16: #{tpu_custom_call.1} parent=1 // pred_region
      %s41 = ssub.s32 2048, 2048
      %42 = vsyncadd [#allocation6], %s41
      %s43 = sshll.u32 [#allocation7], 4
      %s44 = int_to_ptr.vmem [resolvable:$true] %s43
      %49 = dma.hbm_to_vmem [thread:$0]  %s3, 2048, %s44, [#allocation6], 128, 128, 8
    $region17: #{tpu_custom_call.1} parent=1 // pred_fallthru
      _
    // Predicated region
    $region18: #{tpu_custom_call.1} parent=1 // pred_check
      _
    $region19: #{tpu_custom_call.1} parent=1 // pred_check_branch
      %51 = sbr.rel (0) target = $region21
    $region20: #{tpu_custom_call.1} parent=1 // pred_region
      _
    $region21: #{tpu_custom_call.1} parent=1 // pred_fallthru
      _
    // Predicated region
    $region22: #{tpu_custom_call.1} parent=1 // pred_check
      _
    $region23: #{tpu_custom_call.1} parent=1 // pred_check_branch
      %53 = sbr.rel (0) target = $region25
    $region24: #{tpu_custom_call.1} parent=1 // pred_region
      %s55 = ssub.s32 2048, 2048
      %56 = vsyncadd [#allocation9], %s55
      %s57 = sshll.u32 [#allocation8], 4
      %s58 = int_to_ptr.vmem [resolvable:$true] %s57
      %63 = dma.hbm_to_vmem [thread:$0]  %s5, 2048, %s58, [#allocation9], 64, 64, 4
    $region25: #{tpu_custom_call.1} parent=1 // pred_fallthru
      _
    // Predicated region
    $region26: #{tpu_custom_call.1} parent=1 // pred_check
      _
    $region27: #{tpu_custom_call.1} parent=1 // pred_check_branch
      %65 = sbr.rel (0) target = $region29
    $region28: #{tpu_custom_call.1} parent=1 // pred_region
      _
    $region29: #{tpu_custom_call.1} parent=1 // pred_fallthru
      _
    // Predicated region
    $region30: #{tpu_custom_call.1} parent=1 // pred_check
      _
    $region31: #{tpu_custom_call.1} parent=1 // pred_check_branch
      %67 = sbr.rel (0) target = $region33
    $region32: #{tpu_custom_call.1} parent=1 // pred_region
      %68 = dma.done [#allocation3], 128
    $region33: #{tpu_custom_call.1} parent=1 // pred_fallthru
      _
    // Predicated region
    $region34: #{tpu_custom_call.1} parent=1 // pred_check
      _
    $region35: #{tpu_custom_call.1} parent=1 // pred_check_branch
      %70 = sbr.rel (0) target = $region37
    $region36: #{tpu_custom_call.1} parent=1 // pred_region
      %71 = dma.done [#allocation6], 128
    $region37: #{tpu_custom_call.1} parent=1 // pred_fallthru
      _
    // Predicated region
    $region38: #{tpu_custom_call.1} parent=1 // pred_check
      _
    $region39: #{tpu_custom_call.1} parent=1 // pred_check_branch
      %73 = sbr.rel (0) target = $region41
    $region40: #{tpu_custom_call.1} parent=1 // pred_region
      %74 = dma.done [#allocation6], 2048
    $region41: #{tpu_custom_call.1} parent=1 // pred_fallthru
      _
    // Predicated region
    $region42: #{tpu_custom_call.1} parent=1 // pred_check
      _
    $region43: #{tpu_custom_call.1} parent=1 // pred_check_branch
      %76 = sbr.rel (0) target = $region45
    $region44: #{tpu_custom_call.1} parent=1 // pred_region
      %77 = dma.done [#allocation9], 2048
    $region45: #{tpu_custom_call.1} parent=1 // pred_fallthru
      _
    %v79 = vld [vmem:[#allocation2] sm:$0xff]
    %v80 = vld [vmem:[#allocation5] sm:$0xff]
    %v81 = vld [vmem:[%s2] sm:$0x1]
    %v83 = vlaneseq
    %v84 = vshrl.u32 %v83, 7
    %v85 = vsub.s32 0, %v84
    %v86 = vrot.slane %v81, %v85
    %vm88 = vcmask 64512
    %v90 = vsel %vm88, %v79, 0
    %92 = vmatprep.subr.mxu0 0.0
    %93 = vmatpush1.msra.mxu0 %v80
    %94 = vmatprep.subr.mxu0 0.0
    %95 = vmatpush1.msra.mxu0 0.0
    %96 = vmatprep.subr.mxu0 0.0
    %97 = vmatpush1.msra.mxu0 0.0
    %98 = vmatprep.subr.mxu0 0.0
    %99 = vmatpush1.msra.mxu0 0.0
    %100 = vmatprep.subr.mxu0 0.0
    %101 = vmatpush1.msra.mxu0 0.0
    %102 = vmatprep.subr.mxu0 0.0
    %103 = vmatpush1.msra.mxu0 0.0
    %104 = vmatprep.subr.mxu0 0.0
    %105 = vmatpush1.msra.mxu0 0.0
    %106 = vmatprep.subr.mxu0 0.0
    %107 = vmatpush1.msra.mxu0 0.0
    %108 = vmatprep.subr.mxu0 0.0
    %109 = vmatpush1.msra.mxu0 0.0
    %110 = vmatprep.subr.mxu0 0.0
    %111 = vmatpush1.msra.mxu0 0.0
    %112 = vmatprep.subr.mxu0 0.0
    %113 = vmatpush1.msra.mxu0 0.0
    %114 = vmatprep.subr.mxu0 0.0
    %115 = vmatpush1.msra.mxu0 0.0
    %116 = vmatprep.subr.mxu0 0.0
    %117 = vmatpush1.msra.mxu0 0.0
    %118 = vmatprep.subr.mxu0 0.0
    %119 = vmatpush1.msra.mxu0 0.0
    %120 = vmatprep.subr.mxu0 0.0
    %121 = vmatpush1.msra.mxu0 0.0
    %122 = vmatprep.subr.mxu0 0.0
    %123 = vmatpush1.msra.mxu0 0.0
    %124 = vmatprep.subr.mxu0 0.0
    %125 = vmatpush1.msra.mxu0 0.0
    %126 = vmatprep.subr.mxu0 0.0
    %127 = vmatpush1.msra.mxu0 0.0
    %128 = vmatprep.subr.mxu0 0.0
    %129 = vmatpush1.msra.mxu0 0.0
    %130 = vmatprep.subr.mxu0 0.0
    %131 = vmatpush1.msra.mxu0 0.0
    %132 = vmatprep.subr.mxu0 0.0
    %133 = vmatpush1.msra.mxu0 0.0
    %134 = vmatprep.subr.mxu0 0.0
    %135 = vmatpush1.msra.mxu0 0.0
    %136 = vmatprep.subr.mxu0 0.0
    %137 = vmatpush1.msra.mxu0 0.0
    %138 = vmatprep.subr.mxu0 0.0
    %139 = vmatpush1.msra.mxu0 0.0
    %140 = vmatprep.subr.mxu0 0.0
    %141 = vmatpush1.msra.mxu0 0.0
    %142 = vmatprep.subr.mxu0 0.0
    %143 = vmatpush1.msra.mxu0 0.0
    %144 = vmatprep.subr.mxu0 0.0
    %145 = vmatpush1.msra.mxu0 0.0
    %146 = vmatprep.subr.mxu0 0.0
    %147 = vmatpush1.msra.mxu0 0.0
    %148 = vmatprep.subr.mxu0 0.0
    %149 = vmatpush1.msra.mxu0 0.0
    %150 = vmatprep.subr.mxu0 0.0
    %151 = vmatpush1.msra.mxu0 0.0
    %152 = vmatprep.subr.mxu0 0.0
    %153 = vmatpush1.msra.mxu0 0.0
    %154 = vmatprep.subr.mxu0 0.0
    %155 = vmatpush1.msra.mxu0 0.0
    %156 = vmatprep.mubr.f32.mxu0 0.0
    %157 = vmatmul.mubr.f32.gmra.mrb[0].mxu0 %v90
    %v158 = vpop.f32.mrb[0].mxu0
    %v159 = vadd.f32 %v86, %v158
    %v160 = vpop.f32.mrb[0].mxu0
    %161 = vdwg.mxu0
    %v162 = vmax.f32 %v159, 0.0
    %v163 = vpack.c.bf16 %v162, %v162
    %v164 = vld [vmem:[#allocation7] sm:$0xff]
    %v165 = vld [vmem:[#allocation7 + $0x8] sm:$0xff]
    %v166 = vld [vmem:[#allocation7 + $0x10] sm:$0xff]
    %v167 = vld [vmem:[#allocation7 + $0x18] sm:$0xff]
    %v168 = vld [vmem:[#allocation7 + $0x20] sm:$0xff]
    %v169 = vld [vmem:[#allocation7 + $0x28] sm:$0xff]
    %v170 = vld [vmem:[#allocation7 + $0x30] sm:$0xff]
    %v171 = vld [vmem:[#allocation7 + $0x38] sm:$0xff]
    %v172 = vld [vmem:[#allocation7 + $0x40] sm:$0xff]
    %v173 = vld [vmem:[#allocation7 + $0x48] sm:$0xff]
    %v174 = vld [vmem:[#allocation7 + $0x50] sm:$0xff]
    %v175 = vld [vmem:[#allocation7 + $0x58] sm:$0xff]
    %v176 = vld [vmem:[#allocation7 + $0x60] sm:$0xff]
    %v177 = vld [vmem:[#allocation7 + $0x68] sm:$0xff]
    %v178 = vld [vmem:[#allocation7 + $0x70] sm:$0xff]
    %v179 = vld [vmem:[#allocation7 + $0x78] sm:$0xff]
    %v180 = vld [vmem:[%s4] sm:$0x3]
    %v182 = vlaneseq
    %v183 = vshrl.u32 %v182, 7
    %v184 = vsub.s32 0, %v183
    %v185 = vrot.slane %v180, %v184
    %v186 = vlaneseq
    %v187 = vshrl.u32 %v186, 7
    %v188 = vsub.s32 1, %v187
    %v189 = vrot.slane %v180, %v188
    %v208 = vunpack.c.l.b16 %v164
    %v209 = vunpack.c.h.b16 %v164
    %v210 = vunpack.c.l.b16 %v165
    %v211 = vunpack.c.h.b16 %v165
    %v212 = vunpack.c.l.b16 %v166
    %v213 = vunpack.c.h.b16 %v166
    %v214 = vunpack.c.l.b16 %v167
    %v215 = vunpack.c.h.b16 %v167
    %v216 = vunpack.c.l.b16 %v168
    %v217 = vunpack.c.h.b16 %v168
    %v218 = vunpack.c.l.b16 %v169
    %v219 = vunpack.c.h.b16 %v169
    %v220 = vunpack.c.l.b16 %v170
    %v221 = vunpack.c.h.b16 %v170
    %v222 = vunpack.c.l.b16 %v171
    %v223 = vunpack.c.h.b16 %v171
    %v224 = vunpack.c.l.b16 %v172
    %v225 = vunpack.c.h.b16 %v172
    %v226 = vunpack.c.l.b16 %v173
    %v227 = vunpack.c.h.b16 %v173
    %v228 = vunpack.c.l.b16 %v174
    %v229 = vunpack.c.h.b16 %v174
    %v230 = vunpack.c.l.b16 %v175
    %v231 = vunpack.c.h.b16 %v175
    %v232 = vunpack.c.l.b16 %v176
    %v233 = vunpack.c.h.b16 %v176
    %v234 = vunpack.c.l.b16 %v177
    %v235 = vunpack.c.h.b16 %v177
    %v236 = vunpack.c.l.b16 %v178
    %v237 = vunpack.c.h.b16 %v178
    %v238 = vunpack.c.l.b16 %v179
    %v239 = vunpack.c.h.b16 %v179
    %v240 = vpack.c.b16 %v210, %v208
    %v241 = vpack.c.b16 %v211, %v209
    %v242 = vpack.c.b16 %v214, %v212
    %v243 = vpack.c.b16 %v215, %v213
    %v244 = vpack.c.b16 %v218, %v216
    %v245 = vpack.c.b16 %v219, %v217
    %v246 = vpack.c.b16 %v222, %v220
    %v247 = vpack.c.b16 %v223, %v221
    %v248 = vpack.c.b16 %v226, %v224
    %v249 = vpack.c.b16 %v227, %v225
    %v250 = vpack.c.b16 %v230, %v228
    %v251 = vpack.c.b16 %v231, %v229
    %v252 = vpack.c.b16 %v234, %v232
    %v253 = vpack.c.b16 %v235, %v233
    %v254 = vpack.c.b16 %v238, %v236
    %v255 = vpack.c.b16 %v239, %v237
    %272 = vmatprep.subr.bf16.mxu0 %v241
    %273 = vmatpush1.bf16.msra.mxu0 %v240
    %274 = vmatprep.subr.bf16.mxu0 %v243
    %275 = vmatpush1.bf16.msra.mxu0 %v242
    %276 = vmatprep.subr.bf16.mxu0 %v245
    %277 = vmatpush1.bf16.msra.mxu0 %v244
    %278 = vmatprep.subr.bf16.mxu0 %v247
    %279 = vmatpush1.bf16.msra.mxu0 %v246
    %280 = vmatprep.subr.bf16.mxu0 %v249
    %281 = vmatpush1.bf16.msra.mxu0 %v248
    %282 = vmatprep.subr.bf16.mxu0 %v251
    %283 = vmatpush1.bf16.msra.mxu0 %v250
    %284 = vmatprep.subr.bf16.mxu0 %v253
    %285 = vmatpush1.bf16.msra.mxu0 %v252
    %286 = vmatprep.subr.bf16.mxu0 %v255
    %287 = vmatpush1.bf16.msra.mxu0 %v254
    %288 = vmatprep.subr.bf16.mxu0 0
    %289 = vmatpush1.bf16.msra.mxu0 0
    %290 = vmatprep.subr.bf16.mxu0 0
    %291 = vmatpush1.bf16.msra.mxu0 0
    %292 = vmatprep.subr.bf16.mxu0 0
    %293 = vmatpush1.bf16.msra.mxu0 0
    %294 = vmatprep.subr.bf16.mxu0 0
    %295 = vmatpush1.bf16.msra.mxu0 0
    %296 = vmatprep.subr.bf16.mxu0 0
    %297 = vmatpush1.bf16.msra.mxu0 0
    %298 = vmatprep.subr.bf16.mxu0 0
    %299 = vmatpush1.bf16.msra.mxu0 0
    %300 = vmatprep.subr.bf16.mxu0 0
    %301 = vmatpush1.bf16.msra.mxu0 0
    %302 = vmatprep.subr.bf16.mxu0 0
    %303 = vmatpush1.bf16.msra.mxu0 0
    %304 = vmatprep.mubr.bf16.mxu0 0
    %305 = vmatmul.mubr.bf16.gmra.mrb[0].mxu0 %v163
    %v306 = vpop.f32.mrb[0].mxu0
    %v307 = vadd.f32 %v185, %v306
    %v308 = vpop.f32.mrb[0].mxu0
    %v309 = vadd.f32 %v189, %v308
    %v310 = vpop.f32.mrb[0].mxu0
    %v311 = vpop.f32.mrb[0].mxu0
    %312 = vdwg.mxu0
    %v313 = vmax.f32 %v307, 0.0
    %v314 = vmax.f32 %v309, 0.0
    %v315 = vpack.c.bf16 %v313, %v313
    %v316 = vpack.c.bf16 %v314, %v314
    %v317 = vld [vmem:[#allocation8] sm:$0xf]
    %v318 = vld [vmem:[#allocation8 + $0x4] sm:$0xf]
    %v319 = vld [vmem:[#allocation8 + $0x8] sm:$0xf]
    %v320 = vld [vmem:[#allocation8 + $0xc] sm:$0xf]
    %v321 = vld [vmem:[#allocation8 + $0x10] sm:$0xf]
    %v322 = vld [vmem:[#allocation8 + $0x14] sm:$0xf]
    %v323 = vld [vmem:[#allocation8 + $0x18] sm:$0xf]
    %v324 = vld [vmem:[#allocation8 + $0x1c] sm:$0xf]
    %v325 = vld [vmem:[#allocation8 + $0x20] sm:$0xf]
    %v326 = vld [vmem:[#allocation8 + $0x24] sm:$0xf]
    %v327 = vld [vmem:[#allocation8 + $0x28] sm:$0xf]
    %v328 = vld [vmem:[#allocation8 + $0x2c] sm:$0xf]
    %v329 = vld [vmem:[#allocation8 + $0x30] sm:$0xf]
    %v330 = vld [vmem:[#allocation8 + $0x34] sm:$0xf]
    %v331 = vld [vmem:[#allocation8 + $0x38] sm:$0xf]
    %v332 = vld [vmem:[#allocation8 + $0x3c] sm:$0xf]
    %v333 = vld [vmem:[#allocation8 + $0x40] sm:$0xf]
    %v334 = vld [vmem:[#allocation8 + $0x44] sm:$0xf]
    %v335 = vld [vmem:[#allocation8 + $0x48] sm:$0xf]
    %v336 = vld [vmem:[#allocation8 + $0x4c] sm:$0xf]
    %v337 = vld [vmem:[#allocation8 + $0x50] sm:$0xf]
    %v338 = vld [vmem:[#allocation8 + $0x54] sm:$0xf]
    %v339 = vld [vmem:[#allocation8 + $0x58] sm:$0xf]
    %v340 = vld [vmem:[#allocation8 + $0x5c] sm:$0xf]
    %v341 = vld [vmem:[#allocation8 + $0x60] sm:$0xf]
    %v342 = vld [vmem:[#allocation8 + $0x64] sm:$0xf]
    %v343 = vld [vmem:[#allocation8 + $0x68] sm:$0xf]
    %v344 = vld [vmem:[#allocation8 + $0x6c] sm:$0xf]
    %v345 = vld [vmem:[#allocation8 + $0x70] sm:$0xf]
    %v346 = vld [vmem:[#allocation8 + $0x74] sm:$0xf]
    %v347 = vld [vmem:[#allocation8 + $0x78] sm:$0xf]
    %v348 = vld [vmem:[#allocation8 + $0x7c] sm:$0xf]
    %v349 = vld [vmem:[%s6] sm:$0x1]
    %v351 = vlaneseq
    %v352 = vshrl.u32 %v351, 7
    %v353 = vsub.s32 0, %v352
    %v354 = vrot.slane %v349, %v353
    %v388 = vunpack.c.l.b16 %v317
    %v389 = vunpack.c.l.b16 %v318
    %v390 = vunpack.c.l.b16 %v319
    %v391 = vunpack.c.l.b16 %v320
    %v392 = vunpack.c.l.b16 %v321
    %v393 = vunpack.c.l.b16 %v322
    %v394 = vunpack.c.l.b16 %v323
    %v395 = vunpack.c.l.b16 %v324
    %v396 = vunpack.c.l.b16 %v325
    %v397 = vunpack.c.l.b16 %v326
    %v398 = vunpack.c.l.b16 %v327
    %v399 = vunpack.c.l.b16 %v328
    %v400 = vunpack.c.l.b16 %v329
    %v401 = vunpack.c.l.b16 %v330
    %v402 = vunpack.c.l.b16 %v331
    %v403 = vunpack.c.l.b16 %v332
    %v404 = vunpack.c.l.b16 %v333
    %v405 = vunpack.c.l.b16 %v334
    %v406 = vunpack.c.l.b16 %v335
    %v407 = vunpack.c.l.b16 %v336
    %v408 = vunpack.c.l.b16 %v337
    %v409 = vunpack.c.l.b16 %v338
    %v410 = vunpack.c.l.b16 %v339
    %v411 = vunpack.c.l.b16 %v340
    %v412 = vunpack.c.l.b16 %v341
    %v413 = vunpack.c.l.b16 %v342
    %v414 = vunpack.c.l.b16 %v343
    %v415 = vunpack.c.l.b16 %v344
    %v416 = vunpack.c.l.b16 %v345
    %v417 = vunpack.c.l.b16 %v346
    %v418 = vunpack.c.l.b16 %v347
    %v419 = vunpack.c.l.b16 %v348
    %v420 = vpack.c.b16 %v389, %v388
    %v421 = vpack.c.b16 %v391, %v390
    %v422 = vpack.c.b16 %v393, %v392
    %v423 = vpack.c.b16 %v395, %v394
    %v424 = vpack.c.b16 %v397, %v396
    %v425 = vpack.c.b16 %v399, %v398
    %v426 = vpack.c.b16 %v401, %v400
    %v427 = vpack.c.b16 %v403, %v402
    %v428 = vpack.c.b16 %v405, %v404
    %v429 = vpack.c.b16 %v407, %v406
    %v430 = vpack.c.b16 %v409, %v408
    %v431 = vpack.c.b16 %v411, %v410
    %v432 = vpack.c.b16 %v413, %v412
    %v433 = vpack.c.b16 %v415, %v414
    %v434 = vpack.c.b16 %v417, %v416
    %v435 = vpack.c.b16 %v419, %v418
    %452 = vmatprep.subr.bf16.mxu0 0
    %453 = vmatpush1.bf16.msra.mxu0 %v420
    %454 = vmatprep.subr.bf16.mxu0 0
    %455 = vmatpush1.bf16.msra.mxu0 %v421
    %456 = vmatprep.subr.bf16.mxu0 0
    %457 = vmatpush1.bf16.msra.mxu0 %v422
    %458 = vmatprep.subr.bf16.mxu0 0
    %459 = vmatpush1.bf16.msra.mxu0 %v423
    %460 = vmatprep.subr.bf16.mxu0 0
    %461 = vmatpush1.bf16.msra.mxu0 %v424
    %462 = vmatprep.subr.bf16.mxu0 0
    %463 = vmatpush1.bf16.msra.mxu0 %v425
    %464 = vmatprep.subr.bf16.mxu0 0
    %465 = vmatpush1.bf16.msra.mxu0 %v426
    %466 = vmatprep.subr.bf16.mxu0 0
    %467 = vmatpush1.bf16.msra.mxu0 %v427
    %468 = vmatprep.subr.bf16.mxu0 0
    %469 = vmatpush1.bf16.msra.mxu0 %v428
    %470 = vmatprep.subr.bf16.mxu0 0
    %471 = vmatpush1.bf16.msra.mxu0 %v429
    %472 = vmatprep.subr.bf16.mxu0 0
    %473 = vmatpush1.bf16.msra.mxu0 %v430
    %474 = vmatprep.subr.bf16.mxu0 0
    %475 = vmatpush1.bf16.msra.mxu0 %v431
    %476 = vmatprep.subr.bf16.mxu0 0
    %477 = vmatpush1.bf16.msra.mxu0 %v432
    %478 = vmatprep.subr.bf16.mxu0 0
    %479 = vmatpush1.bf16.msra.mxu0 %v433
    %480 = vmatprep.subr.bf16.mxu0 0
    %481 = vmatpush1.bf16.msra.mxu0 %v434
    %482 = vmatprep.subr.bf16.mxu0 0
    %483 = vmatpush1.bf16.msra.mxu0 %v435
    %484 = vmatprep.mubr.bf16.mxu0 %v316
    %485 = vmatmul.mubr.bf16.gmra.mrb[0].mxu0 %v315
    %v486 = vpop.f32.mrb[0].mxu0
    %v487 = vadd.f32 %v354, %v486
    %v488 = vpop.f32.mrb[0].mxu0
    %v489 = vpop.f32.mrb[0].mxu0
    %v490 = vpop.f32.mrb[0].mxu0
    %491 = vdwg.mxu0
    %492 = vmax.xlane.f32.xlu0 %v487
    %v493 = vpop.xlane.xlu0 %492
    %v494 = vsub.f32 %v487, %v493
    %v495 = vmul.f32 %v494, 1.442695
    %v496 = vpow.pop %v495
    %497 = vadd.xlane.f32.xlu0 %v496
    %v498 = vpop.xlane.xlu0 %497
    %v499 = vrcp.pop %v498
    %v500 = vmul.f32 %v496, %v499
    %501 = vst [vmem:[#allocation10] sm:$0xff] %v500
    // Predicated region
    $region46: #{tpu_custom_call.1} parent=1 // pred_check
      _
    $region47: #{tpu_custom_call.1} parent=1 // pred_check_branch
      %503 = sbr.rel (0) target = $region49
    $region48: #{tpu_custom_call.1} parent=1 // pred_region
      %s505 = ssub.s32 128, 128
      %506 = vsyncadd [#allocation4], %s505
      %s508 = sshll.u32 [#allocation10], 4
      %s509 = int_to_ptr.vmem [resolvable:$true] %s508
      %511 = dma.vmem_to_hbm [thread:$0]  %s509, 128, %s7, [#allocation4]
    $region49: #{tpu_custom_call.1} parent=1 // pred_fallthru
      _
    // Predicated region
    $region50: #{tpu_custom_call.1} parent=1 // pred_check
      _
    $region51: #{tpu_custom_call.1} parent=1 // pred_check_branch
      %513 = sbr.rel (0) target = $region53
    $region52: #{tpu_custom_call.1} parent=1 // pred_region
      %514 = dma.done [#allocation4], 128
    $region53: #{tpu_custom_call.1} parent=1 // pred_fallthru
      _
    %515 = vsyncpa [#allocation3], 1
    %516 = vsyncpa [#allocation6], 1
    %517 = vsyncpa [#allocation9], 1
    %518 = vsyncpa [#allocation4], 1

</llo_original>
